<compile_context>
chip_gen: v7x
topology: tpu7x:2x2x1
jax: 0.10.0
libtpu: 0.0.40
codegen_flags: <defaults>
</compile_context>

<pallas_src>
import jax
import jax.numpy as jnp
from jax import lax
from jax.experimental import pallas as pl
from jax.experimental.pallas import tpu as pltpu

IN_FEATURES = 14
HIDDEN = 32
OUT_FEATURES = 3


def _round_up(n, m):
    return ((n + m - 1) // m) * m


def mlp_kernel(x_ref, w1_ref, b1_ref, w2_ref, b2_ref, ot_ref):
    # x_ref : (TB, IN)  f32  -- batch tile, straight from the row-major input
    # w1_ref: (H, IN)   f32  -- nn.Linear weight layout (out_features, in_features)
    # b1_ref: (H, 1)    f32
    # w2_ref: (OUT, H)  f32
    # b2_ref: (OUT, 1)  f32
    # ot_ref: (OUT, TB) f32  -- lane-dense output (batch on the lane axis)
    #
    # First layer as an NT matmul: h[H, TB] = w1[H, IN] @ x[TB, IN]^T.
    # Same dimension-number pattern as q @ k^T in flash attention, so no
    # explicit transpose of the (large) x tile is materialized.
    h = lax.dot_general(
        w1_ref[...], x_ref[...],
        dimension_numbers=(((1,), (1,)), ((), ())),
        preferred_element_type=jnp.float32)                # (H, TB)
    h = jnp.maximum(h + b1_ref[...], 0.0)                  # bias + ReLU
    y = jnp.dot(w2_ref[...], h,
                preferred_element_type=jnp.float32)        # (OUT, TB)
    ot_ref[...] = (y + b2_ref[...]).astype(ot_ref.dtype)


def mlp_forward(x, w1, b1, w2, b2, *, max_batch_tile=16384):
    """Fused MLP forward: relu(x @ W1^T + b1) @ W2^T + b2.

    x: (B, 14); weights/biases in PyTorch nn.Linear layout:
    w1: (32, 14), b1: (32,), w2: (3, 32), b2: (3,).  Returns (B, 3) float32.
    """
    B = x.shape[0]
    x = x.astype(jnp.float32)

    # Batch tile: as large as possible (amortize per-step pipeline overhead),
    # but capped so the grid has >= 2 steps for moderate/large B (v7x has two
    # TensorCores sharding the "parallel" batch axis).  Multiple of 128 so the
    # output block's lane axis is unmasked; small B uses a single full-extent
    # block (no alignment constraint when block == full array).
    tb_target = min(_round_up(max_batch_tile, 128),
                    _round_up(pl.cdiv(B, 2), 128))
    tb = B if B <= tb_target else tb_target
    grid = (pl.cdiv(B, tb),)

    # f32 everywhere for parity with the f32 PyTorch module (HBM-bound kernel,
    # f32 MXU passes are free).  Bias reshapes are tiny (32 / 3 elements).
    w1c = w1.astype(jnp.float32)                           # (H, IN)
    w2c = w2.astype(jnp.float32)                           # (OUT, H)
    b1c = b1.astype(jnp.float32).reshape(HIDDEN, 1)        # (H, 1)
    b2c = b2.astype(jnp.float32).reshape(OUT_FEATURES, 1)  # (OUT, 1)

    flops = 2 * B * (IN_FEATURES * HIDDEN + HIDDEN * OUT_FEATURES)
    bytes_accessed = (x.size * 4 + w1c.size * 4 + w2c.size * 4
                      + b1c.size * 4 + b2c.size * 4
                      + OUT_FEATURES * B * 4)

    yt = pl.pallas_call(
        mlp_kernel,
        out_shape=jax.ShapeDtypeStruct((OUT_FEATURES, B), jnp.float32),
        grid=grid,
        in_specs=[
            # x tile: auto double-buffered over the batch grid axis; fed
            # directly from the row-major input (no transpose/pad/cast pass).
            pl.BlockSpec((tb, IN_FEATURES), lambda i: (i, 0)),
            # Weights / biases: constant index_map -> fetched once, resident.
            pl.BlockSpec((HIDDEN, IN_FEATURES), lambda i: (0, 0)),
            pl.BlockSpec((HIDDEN, 1), lambda i: (0, 0)),
            pl.BlockSpec((OUT_FEATURES, HIDDEN), lambda i: (0, 0)),
            pl.BlockSpec((OUT_FEATURES, 1), lambda i: (0, 0)),
        ],
        out_specs=pl.BlockSpec((OUT_FEATURES, tb), lambda i: (0, i)),
        compiler_params=pltpu.CompilerParams(
            dimension_semantics=("parallel",)),
        cost_estimate=pl.CostEstimate(
            flops=flops, transcendentals=0, bytes_accessed=bytes_accessed),
    )(x, w1c, b1c, w2c, b2c)

    # PyTorch-contract output (B, OUT).  This transpose touches only 3*B f32;
    # consumers that accept the lane-major (OUT, B) layout can use yt directly.
    return yt.T


def init_params(key, in_features=IN_FEATURES, hidden=HIDDEN, out=OUT_FEATURES):
    """Deterministic init mirroring nn.Linear (weight (out, in), bias (out,))."""
    k1, k2, k3, k4 = jax.random.split(key, 4)
    bound1 = 1.0 / jnp.sqrt(in_features)
    w1 = jax.random.uniform(k1, (hidden, in_features), jnp.float32, -bound1, bound1)
    b1 = jax.random.uniform(k2, (hidden,), jnp.float32, -bound1, bound1)
    bound2 = 1.0 / jnp.sqrt(hidden)
    w2 = jax.random.uniform(k3, (out, hidden), jnp.float32, -bound2, bound2)
    b2 = jax.random.uniform(k4, (out,), jnp.float32, -bound2, bound2)
    return w1, b1, w2, b2


if __name__ == "__main__":
    key = jax.random.PRNGKey(0)
    kx, kx2, kp = jax.random.split(key, 3)
    w1, b1, w2, b2 = init_params(kp)

    def ref_mlp(x):
        h = jnp.maximum(x @ w1.T + b1, 0.0)
        return h @ w2.T + b2

    # Loose tolerance so the check passes regardless of whether the MXU runs
    # the f32 matmul at full f32 precision or a bf16-pass default; real
    # implementation bugs would show up as O(0.1-1) errors.
    ATOL = RTOL = 2e-2

    # Small batch consistent with the module (single full-extent block, grid=(1,)).
    x_small = jax.random.normal(kx, (8, IN_FEATURES), jnp.float32)
    y_small = jax.block_until_ready(mlp_forward(x_small, w1, b1, w2, b2))
    assert y_small.shape == (8, OUT_FEATURES)
    assert jnp.allclose(y_small, ref_mlp(x_small), atol=ATOL, rtol=RTOL), float(
        jnp.max(jnp.abs(y_small - ref_mlp(x_small))))

    # Larger batch exercising the tiled path: B=1024 -> TB=512, grid=(2,)
    # (>= 2 steps so both v7x TensorCores can participate).
    x_big = jax.random.normal(kx2, (1024, IN_FEATURES), jnp.float32)
    y_big = jax.block_until_ready(mlp_forward(x_big, w1, b1, w2, b2))
    assert y_big.shape == (1024, OUT_FEATURES)
    assert jnp.allclose(y_big, ref_mlp(x_big), atol=ATOL, rtol=RTOL), float(
        jnp.max(jnp.abs(y_big - ref_mlp(x_big))))

    print("KERNEL_OK")
</pallas_src>

<mosaic_0001>
module attributes {stable_mosaic.version = 11 : i64} {
  func.func @mlp_kernel(%arg0: i32, %arg1: memref<8x14xf32, #tpu.memory_space<vmem>>, %arg2: memref<32x14xf32, #tpu.memory_space<vmem>>, %arg3: memref<32x1xf32, #tpu.memory_space<vmem>>, %arg4: memref<3x32xf32, #tpu.memory_space<vmem>>, %arg5: memref<3x1xf32, #tpu.memory_space<vmem>>, %arg6: memref<3x8xf32, #tpu.memory_space<vmem>>) attributes {dimension_semantics = [#tpu.dimension_semantics<parallel>], iteration_bounds = array<i64: 1>, scalar_prefetch = 0 : i64, scratch_operands = 0 : i64, tpu.core_type = #tpu.core_type<tc>, window_params = [{transform_indices = @transform_0, window_bounds = array<i64: 8, 14>}, {pipeline_mode = #tpu.pipeline_mode<synchronous>, transform_indices = @transform_1, window_bounds = array<i64: 32, 14>}, {pipeline_mode = #tpu.pipeline_mode<synchronous>, transform_indices = @transform_2, window_bounds = array<i64: 32, 1>}, {pipeline_mode = #tpu.pipeline_mode<synchronous>, transform_indices = @transform_3, window_bounds = array<i64: 3, 32>}, {pipeline_mode = #tpu.pipeline_mode<synchronous>, transform_indices = @transform_4, window_bounds = array<i64: 3, 1>}, {transform_indices = @transform_5, window_bounds = array<i64: 3, 8>}]} {
    %c0 = arith.constant 0 : index
    %c0_0 = arith.constant 0 : index
    %0 = vector.load %arg2[%c0, %c0_0] : memref<32x14xf32, #tpu.memory_space<vmem>>, vector<32x14xf32>
    %c0_1 = arith.constant 0 : index
    %c0_2 = arith.constant 0 : index
    %1 = vector.load %arg1[%c0_1, %c0_2] : memref<8x14xf32, #tpu.memory_space<vmem>>, vector<8x14xf32>
    %cst = arith.constant dense<0.000000e+00> : vector<32x8xf32>
    %2 = tpu.matmul %0, %1, %cst {dimension_numbers = #tpu.dot_dimension_numbers<[1], [1], [0], [0], [0, 0, 1, 0], [], []>} : vector<32x14xf32>, vector<8x14xf32>, vector<32x8xf32> -> vector<32x8xf32>
    %c0_3 = arith.constant 0 : index
    %c0_4 = arith.constant 0 : index
    %3 = vector.load %arg3[%c0_3, %c0_4] : memref<32x1xf32, #tpu.memory_space<vmem>>, vector<32x1xf32>
    %4 = vector.broadcast %3 : vector<32x1xf32> to vector<32x8xf32>
    %5 = arith.addf %2, %4 : vector<32x8xf32>
    %cst_5 = arith.constant 0.000000e+00 : f32
    %6 = vector.broadcast %cst_5 : f32 to vector<32x8xf32>
    %7 = arith.maximumf %5, %6 : vector<32x8xf32>
    %c0_6 = arith.constant 0 : index
    %c0_7 = arith.constant 0 : index
    %8 = vector.load %arg4[%c0_6, %c0_7] : memref<3x32xf32, #tpu.memory_space<vmem>>, vector<3x32xf32>
    %cst_8 = arith.constant dense<0.000000e+00> : vector<3x8xf32>
    %9 = tpu.matmul %8, %7, %cst_8 {dimension_numbers = #tpu.dot_dimension_numbers<[1], [0], [0], [1], [0, 0, 1, 1], [], []>} : vector<3x32xf32>, vector<32x8xf32>, vector<3x8xf32> -> vector<3x8xf32>
    %c0_9 = arith.constant 0 : index
    %c0_10 = arith.constant 0 : index
    %10 = vector.load %arg5[%c0_9, %c0_10] : memref<3x1xf32, #tpu.memory_space<vmem>>, vector<3x1xf32>
    %11 = vector.broadcast %10 : vector<3x1xf32> to vector<3x8xf32>
    %12 = arith.addf %9, %11 : vector<3x8xf32>
    %c0_11 = arith.constant 0 : index
    %c0_12 = arith.constant 0 : index
    %13 = vector.load %arg6[%c0_11, %c0_12] : memref<3x8xf32, #tpu.memory_space<vmem>>, vector<3x8xf32>
    tpu.vector_store %arg6[%c0_11, %c0_12], %12 {strides = array<i32>} : memref<3x8xf32, #tpu.memory_space<vmem>>, vector<3x8xf32>,
    return
  }
  func.func @transform_0(%arg0: i32) -> (i32, i32) {
    %c0_i32 = arith.constant 0 : i32
    %c0_i32_0 = arith.constant 0 : i32
    return %arg0, %c0_i32 : i32, i32
  }
  func.func @transform_1(%arg0: i32) -> (i32, i32) {
    %c0_i32 = arith.constant 0 : i32
    %c0_i32_0 = arith.constant 0 : i32
    %c0_i32_1 = arith.constant 0 : i32
    return %c0_i32, %c0_i32_0 : i32, i32
  }
  func.func @transform_2(%arg0: i32) -> (i32, i32) {
    %c0_i32 = arith.constant 0 : i32
    %c0_i32_0 = arith.constant 0 : i32
    %c0_i32_1 = arith.constant 0 : i32
    return %c0_i32, %c0_i32_0 : i32, i32
  }
  func.func @transform_3(%arg0: i32) -> (i32, i32) {
    %c0_i32 = arith.constant 0 : i32
    %c0_i32_0 = arith.constant 0 : i32
    %c0_i32_1 = arith.constant 0 : i32
    return %c0_i32, %c0_i32_0 : i32, i32
  }
  func.func @transform_4(%arg0: i32) -> (i32, i32) {
    %c0_i32 = arith.constant 0 : i32
    %c0_i32_0 = arith.constant 0 : i32
    %c0_i32_1 = arith.constant 0 : i32
    return %c0_i32, %c0_i32_0 : i32, i32
  }
  func.func @transform_5(%arg0: i32) -> (i32, i32) {
    %c0_i32 = arith.constant 0 : i32
    %c0_i32_0 = arith.constant 0 : i32
    return %c0_i32, %arg0 : i32, i32
  }
}

</mosaic_0001>

<llo_original>
// kernel: tpu_custom_call.1
$region0: #{tpu_custom_call.1}
  #allocation0 [shape = 'u32[]', space=smem, size = 0x4, offset = 0x4, fixed_abs, tag = 'smem constant byte address 0x4 - core index']
  #allocation1 [shape = 'u32[144,128]{1,0:T(1,128)}', space=vmem, size = 0x12000, scoped, tag = 'internal scratch']
  %s0 = inlined_call_operand.vmem [shape: f32[8,14], index: 0, kind: input, shape index: {}]
  %s1 = inlined_call_operand.vmem [shape: f32[32,14], index: 1, kind: input, shape index: {}]
  %s2 = inlined_call_operand.vmem [shape: f32[32,1], index: 2, kind: input, shape index: {}]
  %s3 = inlined_call_operand.vmem [shape: f32[3,32], index: 3, kind: input, shape index: {}]
  %s4 = inlined_call_operand.vmem [shape: f32[3,1], index: 4, kind: input, shape index: {}]
  %s5 = inlined_call_operand.hbm [shape: f32[3,8], index: 5, kind: output, shape index: {}]
  %s6 = sld [smem:[#allocation0]]
  $region30: #{tpu_custom_call.1} parent=0
    _
  %s8 = ssub.s32 1, %s6
  %s9 = scalar_select 0, %s8, %s6
  $region1: #{tpu_custom_call.1} parent=0
    #allocation2 [shape = 'u8[2048]{0}', space=vmem, size = 0x800, scoped, tag = 'output window, operand 0, single buffered']
    #allocation3 [shape = 's32[1]{0}', space=sflag, size = 0x4, scoped, tag = 'scoped memory for tpu_custom_call.1']
    %10 = vsyncpa [#allocation3], 0
    // Predicated region
    $region2: #{tpu_custom_call.1} parent=1 // pred_check
      _
    $region3: #{tpu_custom_call.1} parent=1 // pred_check_branch
      %12 = sbr.rel (0) target = $region5
    $region4: #{tpu_custom_call.1} parent=1 // pred_region
      _
    $region5: #{tpu_custom_call.1} parent=1 // pred_fallthru
      _
    // Predicated region
    $region6: #{tpu_custom_call.1} parent=1 // pred_check
      _
    $region7: #{tpu_custom_call.1} parent=1 // pred_check_branch
      %14 = sbr.rel (0) target = $region9
    $region8: #{tpu_custom_call.1} parent=1 // pred_region
      _
    $region9: #{tpu_custom_call.1} parent=1 // pred_fallthru
      _
    // Predicated region
    $region10: #{tpu_custom_call.1} parent=1 // pred_check
      _
    $region11: #{tpu_custom_call.1} parent=1 // pred_check_branch
      %16 = sbr.rel (0) target = $region13
    $region12: #{tpu_custom_call.1} parent=1 // pred_region
      _
    $region13: #{tpu_custom_call.1} parent=1 // pred_fallthru
      _
    // Predicated region
    $region14: #{tpu_custom_call.1} parent=1 // pred_check
      _
    $region15: #{tpu_custom_call.1} parent=1 // pred_check_branch
      %18 = sbr.rel (0) target = $region17
    $region16: #{tpu_custom_call.1} parent=1 // pred_region
      _
    $region17: #{tpu_custom_call.1} parent=1 // pred_fallthru
      _
    // Predicated region
    $region18: #{tpu_custom_call.1} parent=1 // pred_check
      _
    $region19: #{tpu_custom_call.1} parent=1 // pred_check_branch
      %20 = sbr.rel (0) target = $region21
    $region20: #{tpu_custom_call.1} parent=1 // pred_region
      _
    $region21: #{tpu_custom_call.1} parent=1 // pred_fallthru
      _
    %v21 = vld [vmem:[%s1] sm:$0xff]
    %v22 = vld [vmem:[%s1 + $0x8] sm:$0xff]
    %v23 = vld [vmem:[%s1 + $0x10] sm:$0xff]
    %v24 = vld [vmem:[%s1 + $0x18] sm:$0xff]
    %v25 = vld [vmem:[%s0] sm:$0xff]
    %v26 = vld [vmem:[%s2] sm:$0xff]
    %v27 = vld [vmem:[%s2 + $0x8] sm:$0xff]
    %v28 = vld [vmem:[%s2 + $0x10] sm:$0xff]
    %v29 = vld [vmem:[%s2 + $0x18] sm:$0xff]
    %31 = vset.pattern.permute.xlu0 0
    %32 = vperm.xlu0 %31, %v26
    %v33 = vpop.permute.xlu0 %32
    %36 = vset.pattern.permute.xlu0 0
    %37 = vperm.xlu0 %36, %v27
    %v38 = vpop.permute.xlu0 %37
    %41 = vset.pattern.permute.xlu0 0
    %42 = vperm.xlu0 %41, %v28
    %v43 = vpop.permute.xlu0 %42
    %46 = vset.pattern.permute.xlu0 0
    %47 = vperm.xlu0 %46, %v29
    %v48 = vpop.permute.xlu0 %47
    %vm50 = vcmask 113664
    %v52 = vsel %vm50, %v21, 0
    %v55 = vsel %vm50, %v22, 0
    %v58 = vsel %vm50, %v23, 0
    %v61 = vsel %vm50, %v24, 0
    %v64 = vsel %vm50, %v25, 0
    %66 = vmatprep.subr.mxu0 0.0
    %67 = vmatpush1.xpose.msra.mxu0 %v64
    %68 = vmatprep.subr.mxu0 0.0
    %69 = vmatpush1.xpose.msra.mxu0 0.0
    %70 = vmatprep.subr.mxu0 0.0
    %71 = vmatpush1.xpose.msra.mxu0 0.0
    %72 = vmatprep.subr.mxu0 0.0
    %73 = vmatpush1.xpose.msra.mxu0 0.0
    %74 = vmatprep.subr.mxu0 0.0
    %75 = vmatpush1.xpose.msra.mxu0 0.0
    %76 = vmatprep.subr.mxu0 0.0
    %77 = vmatpush1.xpose.msra.mxu0 0.0
    %78 = vmatprep.subr.mxu0 0.0
    %79 = vmatpush1.xpose.msra.mxu0 0.0
    %80 = vmatprep.subr.mxu0 0.0
    %81 = vmatpush1.xpose.msra.mxu0 0.0
    %82 = vmatprep.subr.mxu0 0.0
    %83 = vmatpush1.xpose.msra.mxu0 0.0
    %84 = vmatprep.subr.mxu0 0.0
    %85 = vmatpush1.xpose.msra.mxu0 0.0
    %86 = vmatprep.subr.mxu0 0.0
    %87 = vmatpush1.xpose.msra.mxu0 0.0
    %88 = vmatprep.subr.mxu0 0.0
    %89 = vmatpush1.xpose.msra.mxu0 0.0
    %90 = vmatprep.subr.mxu0 0.0
    %91 = vmatpush1.xpose.msra.mxu0 0.0
    %92 = vmatprep.subr.mxu0 0.0
    %93 = vmatpush1.xpose.msra.mxu0 0.0
    %94 = vmatprep.subr.mxu0 0.0
    %95 = vmatpush1.xpose.msra.mxu0 0.0
    %96 = vmatprep.subr.mxu0 0.0
    %97 = vmatpush1.xpose.msra.mxu0 0.0
    %98 = vmatprep.subr.mxu0 0.0
    %99 = vmatpush1.xpose.msra.mxu0 0.0
    %100 = vmatprep.subr.mxu0 0.0
    %101 = vmatpush1.xpose.msra.mxu0 0.0
    %102 = vmatprep.subr.mxu0 0.0
    %103 = vmatpush1.xpose.msra.mxu0 0.0
    %104 = vmatprep.subr.mxu0 0.0
    %105 = vmatpush1.xpose.msra.mxu0 0.0
    %106 = vmatprep.subr.mxu0 0.0
    %107 = vmatpush1.xpose.msra.mxu0 0.0
    %108 = vmatprep.subr.mxu0 0.0
    %109 = vmatpush1.xpose.msra.mxu0 0.0
    %110 = vmatprep.subr.mxu0 0.0
    %111 = vmatpush1.xpose.msra.mxu0 0.0
    %112 = vmatprep.subr.mxu0 0.0
    %113 = vmatpush1.xpose.msra.mxu0 0.0
    %114 = vmatprep.subr.mxu0 0.0
    %115 = vmatpush1.xpose.msra.mxu0 0.0
    %116 = vmatprep.subr.mxu0 0.0
    %117 = vmatpush1.xpose.msra.mxu0 0.0
    %118 = vmatprep.subr.mxu0 0.0
    %119 = vmatpush1.xpose.msra.mxu0 0.0
    %120 = vmatprep.subr.mxu0 0.0
    %121 = vmatpush1.xpose.msra.mxu0 0.0
    %122 = vmatprep.subr.mxu0 0.0
    %123 = vmatpush1.xpose.msra.mxu0 0.0
    %124 = vmatprep.subr.mxu0 0.0
    %125 = vmatpush1.xpose.msra.mxu0 0.0
    %126 = vmatprep.subr.mxu0 0.0
    %127 = vmatpush1.xpose.msra.mxu0 0.0
    %128 = vmatprep.subr.mxu0 0.0
    %129 = vmatpush1.xpose.msra.mxu0 0.0
    %130 = vmatprep.mubr.f32.mxu0 0.0
    %131 = vmatmul.mubr.f32.gmra.mrb[0].mxu0 %v52
    %v132 = vpop.f32.mrb[0].mxu0
    %v133 = vadd.f32 %v33, %v132
    %v134 = vpop.f32.mrb[0].mxu0
    %135 = vmatprep.mubr.f32.mxu0 0.0
    %136 = vmatmul.mubr.f32.gmra.mrb[0].mxu0 %v55
    %v137 = vpop.f32.mrb[0].mxu0
    %v138 = vadd.f32 %v38, %v137
    %v139 = vpop.f32.mrb[0].mxu0
    %140 = vmatprep.mubr.f32.mxu0 0.0
    %141 = vmatmul.mubr.f32.gmra.mrb[0].mxu0 %v58
    %v142 = vpop.f32.mrb[0].mxu0
    %v143 = vadd.f32 %v43, %v142
    %v144 = vpop.f32.mrb[0].mxu0
    %145 = vmatprep.mubr.f32.mxu0 0.0
    %146 = vmatmul.mubr.f32.gmra.mrb[0].mxu0 %v61
    %v147 = vpop.f32.mrb[0].mxu0
    %v148 = vadd.f32 %v48, %v147
    %v149 = vpop.f32.mrb[0].mxu0
    %150 = vdwg.mxu0
    %v151 = vmax.f32 %v133, 0.0
    %v152 = vmax.f32 %v138, 0.0
    %v153 = vmax.f32 %v143, 0.0
    %v154 = vmax.f32 %v148, 0.0
    %v155 = vld [vmem:[%s3] sm:$0x7]
    %v156 = vld [vmem:[%s4] sm:$0x7]
    %158 = vset.pattern.permute.xlu0 0
    %159 = vperm.xlu0 %158, %v156
    %v160 = vpop.permute.xlu0 %159
    %vm162 = vcmask 261120
    %v164 = vsel %vm162, %v155, 0
    %166 = vmatprep.subr.mxu0 0.0
    %167 = vmatpush1.msra.mxu0 %v151
    %168 = vmatprep.subr.mxu0 0.0
    %169 = vmatpush1.msra.mxu0 %v152
    %170 = vmatprep.subr.mxu0 0.0
    %171 = vmatpush1.msra.mxu0 %v153
    %172 = vmatprep.subr.mxu0 0.0
    %173 = vmatpush1.msra.mxu0 %v154
    %174 = vmatprep.subr.mxu0 0.0
    %175 = vmatpush1.msra.mxu0 0.0
    %176 = vmatprep.subr.mxu0 0.0
    %177 = vmatpush1.msra.mxu0 0.0
    %178 = vmatprep.subr.mxu0 0.0
    %179 = vmatpush1.msra.mxu0 0.0
    %180 = vmatprep.subr.mxu0 0.0
    %181 = vmatpush1.msra.mxu0 0.0
    %182 = vmatprep.subr.mxu0 0.0
    %183 = vmatpush1.msra.mxu0 0.0
    %184 = vmatprep.subr.mxu0 0.0
    %185 = vmatpush1.msra.mxu0 0.0
    %186 = vmatprep.subr.mxu0 0.0
    %187 = vmatpush1.msra.mxu0 0.0
    %188 = vmatprep.subr.mxu0 0.0
    %189 = vmatpush1.msra.mxu0 0.0
    %190 = vmatprep.subr.mxu0 0.0
    %191 = vmatpush1.msra.mxu0 0.0
    %192 = vmatprep.subr.mxu0 0.0
    %193 = vmatpush1.msra.mxu0 0.0
    %194 = vmatprep.subr.mxu0 0.0
    %195 = vmatpush1.msra.mxu0 0.0
    %196 = vmatprep.subr.mxu0 0.0
    %197 = vmatpush1.msra.mxu0 0.0
    %198 = vmatprep.subr.mxu0 0.0
    %199 = vmatpush1.msra.mxu0 0.0
    %200 = vmatprep.subr.mxu0 0.0
    %201 = vmatpush1.msra.mxu0 0.0
    %202 = vmatprep.subr.mxu0 0.0
    %203 = vmatpush1.msra.mxu0 0.0
    %204 = vmatprep.subr.mxu0 0.0
    %205 = vmatpush1.msra.mxu0 0.0
    %206 = vmatprep.subr.mxu0 0.0
    %207 = vmatpush1.msra.mxu0 0.0
    %208 = vmatprep.subr.mxu0 0.0
    %209 = vmatpush1.msra.mxu0 0.0
    %210 = vmatprep.subr.mxu0 0.0
    %211 = vmatpush1.msra.mxu0 0.0
    %212 = vmatprep.subr.mxu0 0.0
    %213 = vmatpush1.msra.mxu0 0.0
    %214 = vmatprep.subr.mxu0 0.0
    %215 = vmatpush1.msra.mxu0 0.0
    %216 = vmatprep.subr.mxu0 0.0
    %217 = vmatpush1.msra.mxu0 0.0
    %218 = vmatprep.subr.mxu0 0.0
    %219 = vmatpush1.msra.mxu0 0.0
    %220 = vmatprep.subr.mxu0 0.0
    %221 = vmatpush1.msra.mxu0 0.0
    %222 = vmatprep.subr.mxu0 0.0
    %223 = vmatpush1.msra.mxu0 0.0
    %224 = vmatprep.subr.mxu0 0.0
    %225 = vmatpush1.msra.mxu0 0.0
    %226 = vmatprep.subr.mxu0 0.0
    %227 = vmatpush1.msra.mxu0 0.0
    %228 = vmatprep.subr.mxu0 0.0
    %229 = vmatpush1.msra.mxu0 0.0
    %230 = vmatprep.mubr.f32.mxu0 0.0
    %231 = vmatmul.mubr.f32.gmra.mrb[0].mxu0 %v164
    %v232 = vpop.f32.mrb[0].mxu0
    %v233 = vadd.f32 %v160, %v232
    %v234 = vpop.f32.mrb[0].mxu0
    %235 = vdwg.mxu0
    %vm236 = vcmask 59392
    %237 = vst.msk [vmem:[#allocation2] sm:$0x7] %vm236, %v233
    // Predicated region
    $region22: #{tpu_custom_call.1} parent=1 // pred_check
      _
    $region23: #{tpu_custom_call.1} parent=1 // pred_check_branch
      %239 = sbr.rel (0) target = $region25
    $region24: #{tpu_custom_call.1} parent=1 // pred_region
      %s241 = ssub.s32 64, 64
      %242 = vsyncadd [#allocation3], %s241
      %s244 = sshll.u32 [#allocation2], 4
      %s245 = int_to_ptr.vmem [resolvable:$true] %s244
      %247 = dma.vmem_to_hbm [thread:$0]  %s245, 64, %s5, [#allocation3]
    $region25: #{tpu_custom_call.1} parent=1 // pred_fallthru
      _
    // Predicated region
    $region26: #{tpu_custom_call.1} parent=1 // pred_check
      _
    $region27: #{tpu_custom_call.1} parent=1 // pred_check_branch
      %249 = sbr.rel (0) target = $region29
    $region28: #{tpu_custom_call.1} parent=1 // pred_region
      %250 = dma.done [#allocation3], 64
    $region29: #{tpu_custom_call.1} parent=1 // pred_fallthru
      _
    %251 = vsyncpa [#allocation3], 1

</llo_original>
